<compile_context>
chip_gen: v7x
topology: tpu7x:2x2x1
jax: 0.10.0
libtpu: 0.0.40
codegen_flags: <defaults>
</compile_context>

<pallas_src>
import jax
import jax.numpy as jnp
from jax.experimental import pallas as pl
from jax.experimental.pallas import tpu as pltpu


def critic_kernel(x_ref, w_ref, b_ref, o_ref):
    # x_ref: (TB, D) VMEM, w_ref: (1, D) VMEM, b_ref: (1,) SMEM, o_ref: (TB, 1) VMEM
    x = x_ref[...]                 # (TB, D)
    w = w_ref[...]                 # (1, D)  — broadcasts over rows on the VPU
    b = b_ref[0]                   # scalar bias from SMEM
    # Row-wise dot as VPU multiply + XLU lane reduce (no MXU, no transpose).
    y = jnp.sum(x * w, axis=-1, keepdims=True) + b   # (TB, 1) f32
    o_ref[...] = y.astype(o_ref.dtype)


def critic_forward(x, weight, bias, *, block_rows=1024):
    """x: (B, D) f32, weight: (1, D) f32, bias: (1,) f32 -> value: (B,) f32."""
    B, D = x.shape
    assert weight.shape == (1, D), weight.shape
    x = x.astype(jnp.float32)
    weight = weight.astype(jnp.float32)
    bias = jnp.asarray(bias, dtype=jnp.float32).reshape(1)

    # Batch tile: multiple of 8 (f32 sublane), capped at block_rows, and kept
    # well inside the v7x per-core VMEM budget even with double-buffering.
    tb = min(block_rows, B)
    tb = max(8, ((tb + 7) // 8) * 8)
    vmem_cap = 8 * 1024 * 1024  # bytes, conservative per-buffer cap
    while tb > 8 and tb * D * 4 * 2 > vmem_cap:
        tb //= 2
    tb = max(8, ((tb + 7) // 8) * 8)

    # Pad the batch so the grid divides evenly (cheap, sliced off below).
    num_blocks = -(-B // tb)
    b_padded = num_blocks * tb
    if b_padded != B:
        x = jnp.pad(x, ((0, b_padded - B), (0, 0)))

    out = pl.pallas_call(
        critic_kernel,
        out_shape=jax.ShapeDtypeStruct((b_padded, 1), jnp.float32),
        grid=(num_blocks,),
        in_specs=[
            # Batch-tiled activations: pipelined HBM->VMEM per grid step.
            pl.BlockSpec((tb, D), lambda i: (i, 0)),
            # Grid-invariant weight row: stays resident in VMEM.
            pl.BlockSpec((1, D), lambda i: (0, 0)),
            # Scalar bias lives in SMEM (no padded VMEM tile, no DMA slot).
            pl.BlockSpec(memory_space=pltpu.MemorySpace.SMEM),
        ],
        out_specs=pl.BlockSpec((tb, 1), lambda i: (i, 0)),
        compiler_params=pltpu.CompilerParams(
            dimension_semantics=("parallel",),
        ),
    )(x, weight, bias)

    # squeeze(-1) + drop padding — glue, done outside the kernel
    return out[:B, 0]


if __name__ == "__main__":
    key = jax.random.PRNGKey(0)

    # --- 1) Module-faithful case: zero-initialized Linear, small demo shape.
    batch, input_dim = 8, 32
    x = jax.random.normal(key, (batch, input_dim), dtype=jnp.float32)
    weight0 = jnp.zeros((1, input_dim), dtype=jnp.float32)
    bias0 = jnp.zeros((1,), dtype=jnp.float32)

    value = critic_forward(x, weight0, bias0)
    value = jax.block_until_ready(value)
    ref = (x @ weight0.T + bias0).squeeze(-1)
    assert value.shape == (batch,), value.shape
    assert jnp.allclose(value, ref, atol=1e-6)

    # --- 2) Random weights + non-multiple batch: exercises the multiply/
    #        reduce math, batch tiling, and the padding path.
    k1, k2, k3 = jax.random.split(jax.random.PRNGKey(0), 3)
    B2, D2 = 1000, 32
    x2 = jax.random.normal(k1, (B2, D2), dtype=jnp.float32)
    w2 = jax.random.normal(k2, (1, D2), dtype=jnp.float32) * 0.1
    b2 = jax.random.normal(k3, (1,), dtype=jnp.float32)

    value2 = critic_forward(x2, w2, b2, block_rows=512)
    value2 = jax.block_until_ready(value2)
    ref2 = (x2 @ w2.T + b2).squeeze(-1)
    assert value2.shape == (B2,), value2.shape
    assert jnp.allclose(value2, ref2, atol=1e-4), float(jnp.max(jnp.abs(value2 - ref2)))

    print("KERNEL_OK")
</pallas_src>

<mosaic_0001>
module attributes {stable_mosaic.version = 11 : i64} {
  func.func @critic_kernel(%arg0: i32, %arg1: memref<8x32xf32, #tpu.memory_space<vmem>>, %arg2: memref<1x32xf32, #tpu.memory_space<vmem>>, %arg3: memref<1xf32, #tpu.memory_space<smem>>, %arg4: memref<8x1xf32, #tpu.memory_space<vmem>>) attributes {dimension_semantics = [#tpu.dimension_semantics<parallel>], iteration_bounds = array<i64: 1>, scalar_prefetch = 0 : i64, scratch_operands = 0 : i64, tpu.core_type = #tpu.core_type<tc>, window_params = [{transform_indices = @transform_0, window_bounds = array<i64: 8, 32>}, {pipeline_mode = #tpu.pipeline_mode<synchronous>, transform_indices = @transform_1, window_bounds = array<i64: 1, 32>}, {transform_indices = @transform_2, window_bounds = array<i64: 1>}, {transform_indices = @transform_3, window_bounds = array<i64: 8, 1>}]} {
    %c0 = arith.constant 0 : index
    %c0_0 = arith.constant 0 : index
    %0 = vector.load %arg1[%c0, %c0_0] : memref<8x32xf32, #tpu.memory_space<vmem>>, vector<8x32xf32>
    %c0_1 = arith.constant 0 : index
    %c0_2 = arith.constant 0 : index
    %1 = vector.load %arg2[%c0_1, %c0_2] : memref<1x32xf32, #tpu.memory_space<vmem>>, vector<1x32xf32>
    %c0_3 = arith.constant 0 : index
    %2 = memref.load %arg3[%c0_3] : memref<1xf32, #tpu.memory_space<smem>>
    %3 = vector.broadcast %1 : vector<1x32xf32> to vector<8x32xf32>
    %4 = arith.mulf %0, %3 : vector<8x32xf32>
    %cst = arith.constant dense<0.000000e+00> : vector<8xf32>
    %5 = vector.multi_reduction <add>, %4, %cst [1] : vector<8x32xf32> to vector<8xf32>
    %6 = vector.shape_cast %5 : vector<8xf32> to vector<8x1xf32>
    %7 = vector.broadcast %2 : f32 to vector<8x1xf32>
    %8 = arith.addf %6, %7 : vector<8x1xf32>
    %c0_4 = arith.constant 0 : index
    %c0_5 = arith.constant 0 : index
    %9 = vector.load %arg4[%c0_4, %c0_5] : memref<8x1xf32, #tpu.memory_space<vmem>>, vector<8x1xf32>
    tpu.vector_store %arg4[%c0_4, %c0_5], %8 {strides = array<i32>} : memref<8x1xf32, #tpu.memory_space<vmem>>, vector<8x1xf32>,
    return
  }
  func.func @transform_0(%arg0: i32) -> (i32, i32) {
    %c0_i32 = arith.constant 0 : i32
    %c0_i32_0 = arith.constant 0 : i32
    return %arg0, %c0_i32 : i32, i32
  }
  func.func @transform_1(%arg0: i32) -> (i32, i32) {
    %c0_i32 = arith.constant 0 : i32
    %c0_i32_0 = arith.constant 0 : i32
    %c0_i32_1 = arith.constant 0 : i32
    return %c0_i32, %c0_i32_0 : i32, i32
  }
  func.func @transform_2(%arg0: i32) -> i32 {
    %c0_i32 = arith.constant 0 : i32
    %c0_i32_0 = arith.constant 0 : i32
    return %c0_i32 : i32
  }
  func.func @transform_3(%arg0: i32) -> (i32, i32) {
    %c0_i32 = arith.constant 0 : i32
    %c0_i32_0 = arith.constant 0 : i32
    return %arg0, %c0_i32 : i32, i32
  }
}

</mosaic_0001>

<llo_original>
// kernel: tpu_custom_call.1
$region0: #{tpu_custom_call.1}
  #allocation0 [shape = 'u32[]', space=smem, size = 0x4, offset = 0x4, fixed_abs, tag = 'smem constant byte address 0x4 - core index']
  #allocation1 [shape = 'u32[144,128]{1,0:T(1,128)}', space=vmem, size = 0x12000, scoped, tag = 'internal scratch']
  #allocation2 [shape = 'f32[1]{0:T(128)S(6)}', space=smem, size = 0x200, scoped, tag = 'scoped memory for tpu_custom_call.1']
  %s0 = inlined_call_operand.hbm [shape: f32[8,32], index: 0, kind: input, shape index: {}]
  %s1 = inlined_call_operand.vmem [shape: f32[1,32], index: 1, kind: input, shape index: {}]
  %s2 = inlined_call_operand.<no memory space> [shape: f32[1], index: 2, kind: input, shape index: {}]
  %s3 = inlined_call_operand.vmem [shape: f32[8,1], index: 3, kind: output, shape index: {}]
  %s4 = sld [smem:[#allocation0]]
  $region26: #{tpu_custom_call.1} parent=0
    _
  %s6 = ssub.s32 1, %s4
  %s7 = scalar_select 0, %s6, %s4
  %8 = sst [smem:[#allocation2]] %s2
  $region1: #{tpu_custom_call.1} parent=0
    #allocation3 [shape = 'u8[4096]{0}', space=vmem, size = 0x1000, scoped, tag = 'input window, operand 0, single buffered']
    #allocation4 [shape = 's32[1]{0}', space=sflag, size = 0x4, scoped, tag = 'scoped memory for tpu_custom_call.1']
    %9 = vsyncpa [#allocation4], 0
    // Predicated region
    $region2: #{tpu_custom_call.1} parent=1 // pred_check
      _
    $region3: #{tpu_custom_call.1} parent=1 // pred_check_branch
      %11 = sbr.rel (0) target = $region5
    $region4: #{tpu_custom_call.1} parent=1 // pred_region
      %s13 = ssub.s32 128, 128
      %14 = vsyncadd [#allocation4], %s13
      %s16 = sshll.u32 [#allocation3], 4
      %s17 = int_to_ptr.vmem [resolvable:$true] %s16
      %19 = dma.hbm_to_vmem [thread:$0]  %s0, 128, %s17, [#allocation4]
    $region5: #{tpu_custom_call.1} parent=1 // pred_fallthru
      _
    // Predicated region
    $region6: #{tpu_custom_call.1} parent=1 // pred_check
      _
    $region7: #{tpu_custom_call.1} parent=1 // pred_check_branch
      %21 = sbr.rel (0) target = $region9
    $region8: #{tpu_custom_call.1} parent=1 // pred_region
      _
    $region9: #{tpu_custom_call.1} parent=1 // pred_fallthru
      _
    // Predicated region
    $region10: #{tpu_custom_call.1} parent=1 // pred_check
      _
    $region11: #{tpu_custom_call.1} parent=1 // pred_check_branch
      %23 = sbr.rel (0) target = $region13
    $region12: #{tpu_custom_call.1} parent=1 // pred_region
      _
    $region13: #{tpu_custom_call.1} parent=1 // pred_fallthru
      _
    // Predicated region
    $region14: #{tpu_custom_call.1} parent=1 // pred_check
      _
    $region15: #{tpu_custom_call.1} parent=1 // pred_check_branch
      %25 = sbr.rel (0) target = $region17
    $region16: #{tpu_custom_call.1} parent=1 // pred_region
      %26 = dma.done [#allocation4], 128
    $region17: #{tpu_custom_call.1} parent=1 // pred_fallthru
      _
    %v27 = vld [vmem:[#allocation3] sm:$0xff]
    %v28 = vld [vmem:[%s1] sm:$0x1]
    %s29 = sld [smem:[#allocation2]]
    %v31 = vlaneseq
    %v32 = vshrl.u32 %v31, 7
    %v33 = vsub.s32 0, %v32
    %v34 = vrot.slane %v28, %v33
    %v36 = vmul.f32 %v27, %v34
    %vm37 = vcmask 261120
    %v38 = vsel %vm37, %v36, 0.0
    %39 = vadd.xlane.f32.xlu0 %v38
    %v40 = vpop.xlane.xlu0 %39
    %v41 = vstv %s29
    %v42 = vadd.f32 %v40, %v41
    %vm43 = vcmask 7168
    %44 = vst.msk [vmem:[%s3] sm:$0xff] %vm43, %v42
    // Predicated region
    $region18: #{tpu_custom_call.1} parent=1 // pred_check
      _
    $region19: #{tpu_custom_call.1} parent=1 // pred_check_branch
      %46 = sbr.rel (0) target = $region21
    $region20: #{tpu_custom_call.1} parent=1 // pred_region
      _
    $region21: #{tpu_custom_call.1} parent=1 // pred_fallthru
      _
    // Predicated region
    $region22: #{tpu_custom_call.1} parent=1 // pred_check
      _
    $region23: #{tpu_custom_call.1} parent=1 // pred_check_branch
      %48 = sbr.rel (0) target = $region25
    $region24: #{tpu_custom_call.1} parent=1 // pred_region
      _
    $region25: #{tpu_custom_call.1} parent=1 // pred_fallthru
      _
    %49 = vsyncpa [#allocation4], 1

</llo_original>
